<compile_context>
chip_gen: v6e
topology: v6e:2x2x1
jax: 0.10.0
libtpu: 0.0.40
codegen_flags: <defaults>
</compile_context>

<pallas_src>
import functools

import jax
import jax.numpy as jnp
from jax import lax
from jax.experimental import pallas as pl
from jax.experimental.pallas import tpu as pltpu

EPS = 1e-5
_LANE = 128
_VMEM_BUDGET = 26 << 20  # target live working set (bytes), safe on v5e/v6e/v7x


def fc_bn_relu_kernel(x_ref, w_ref, gamma_ref, beta_ref, o_ref):
    # x_ref:     (N,  tk)  bf16 -- full batch, one K tile
    # w_ref:     (tn, tk)  bf16 -- native nn.Linear layout (out_dim, in_dim) tile
    # gamma_ref: (1,  tn)  f32
    # beta_ref:  (1,  tn)  f32
    # o_ref:     (N,  tn)  f32  -- resident across the K axis; doubles as the
    #                             accumulator (block index (0, j) is k-invariant)
    k = pl.program_id(1)

    @pl.when(k == 0)
    def _():
        o_ref[...] = jnp.zeros_like(o_ref)

    # Linear (no bias: absorbed by the batch mean below).  Contract the shared K
    # axis so the MXU consumes W without a wrapper transpose:
    # (N, tk) x (tn, tk) -> (N, tn), bf16 operands, f32 accumulation.
    o_ref[...] += lax.dot_general(
        x_ref[...], w_ref[...],
        dimension_numbers=(((1,), (1,)), ((), ())),
        preferred_element_type=jnp.float32)

    @pl.when(k == pl.num_programs(1) - 1)
    def _():
        y = o_ref[...]                                     # (N, tn) f32
        inv_n = 1.0 / y.shape[0]
        # Pass 1: both reductions from a single read of the accumulator.
        s1 = jnp.sum(y, axis=0, keepdims=True)             # (1, tn)
        s2 = jnp.sum(y * y, axis=0, keepdims=True)         # (1, tn)
        mean = s1 * inv_n
        var = jnp.maximum(s2 * inv_n - mean * mean, 0.0)   # f32; clamp cancellation
        inv_std = lax.rsqrt(var + EPS)                     # EUP
        # Fold gamma / mean / beta at lane width before the full-width broadcast.
        scale = gamma_ref[...] * inv_std                   # (1, tn)
        shift = beta_ref[...] - mean * scale               # (1, tn)
        # Pass 2: fused normalize + affine + ReLU.
        o_ref[...] = jnp.maximum(y * scale + shift, 0.0).astype(o_ref.dtype)


def _round_up(v, m):
    return (v + m - 1) // m * m


def _divisor_tile(dim, cap):
    """Largest multiple-of-128 divisor of `dim` that is <= cap (0 if none)."""
    best = 0
    t = _LANE
    while t <= cap:
        if dim % t == 0:
            best = t
        t += _LANE
    return best


def _plan(n, in_dim, out_dim, budget=_VMEM_BUDGET):
    """Pick (tn, tk, padded out_dim, padded in_dim).

    Live VMEM model: double-buffered bf16 x tile + double-buffered bf16 W tile
    + (double-buffered) resident f32 output tile.
    """
    # Non-128-multiple output lanes force masked vst partial stores; pad once
    # the dim is large enough that a full-dim block is no longer the obvious
    # choice.  Padded features are zero weight / gamma / beta -> output 0,
    # trimmed in the wrapper.
    out_p = out_dim if out_dim <= _LANE else _round_up(out_dim, _LANE)
    in_p = in_dim if in_dim <= _LANE else _round_up(in_dim, _LANE)

    def live(tn, tk):
        return 2 * n * tk * 2 + 2 * tn * tk * 2 + 2 * n * tn * 4

    # --- out_dim tile ---
    tn = out_p if out_p <= 512 else (_divisor_tile(out_p, 512) or out_p)
    # Keep >= 2 j tiles so the "parallel" axis has work for both v7x TensorCores.
    if tn == out_p and tn % 256 == 0:
        tn //= 2
    # Shrink if the resident f32 output tile alone threatens the budget (large N).
    while tn > _LANE and tn % 256 == 0 and live(tn, min(in_p, _LANE)) > budget:
        tn //= 2

    # --- K tile: prefer a single K step (x grid-invariant -> fetched once). ---
    if live(tn, in_p) <= budget:
        tk = in_p
    else:
        tk = _divisor_tile(in_p, 512) or in_p
        while tk > _LANE and tk % 256 == 0 and live(tn, tk) > budget:
            tk //= 2
    return tn, tk, out_p, in_p


@functools.partial(jax.jit, static_argnames=("bn_domain",))
def fc_bn_relu_domain(x, weight, bias, gammas, betas, bn_domain=0):
    """x: (N, in_dim) f32; weight: (out_dim, in_dim); bias: (out_dim,) [dead under
    training-mode BN, kept for API compatibility]; gammas/betas:
    (num_domains_bn, out_dim). Returns (N, out_dim) f32."""
    del bias  # absorbed exactly by the batch mean under training-mode BatchNorm
    n, in_dim = x.shape
    out_dim = weight.shape[0]

    tn, tk, out_p, in_p = _plan(n, in_dim, out_dim)

    gamma2 = gammas[bn_domain].reshape(1, out_dim)   # domain selection (glue)
    beta2 = betas[bn_domain].reshape(1, out_dim)

    # Zero-pad awkward feature dims (no-op math: zero x/W columns, zero-weight
    # output features are trimmed below).
    if in_p != in_dim:
        x = jnp.pad(x, ((0, 0), (0, in_p - in_dim)))
        weight = jnp.pad(weight, ((0, 0), (0, in_p - in_dim)))
    if out_p != out_dim:
        weight = jnp.pad(weight, ((0, out_p - out_dim), (0, 0)))
        gamma2 = jnp.pad(gamma2, ((0, 0), (0, out_p - out_dim)))
        beta2 = jnp.pad(beta2, ((0, 0), (0, out_p - out_dim)))

    # bf16 operands for the MXU; accumulation and the BN/ReLU epilogue stay f32.
    x_bf = x.astype(jnp.bfloat16)
    w_bf = weight.astype(jnp.bfloat16)

    grid = (out_p // tn, in_p // tk)
    live = 2 * n * tk * 2 + 2 * tn * tk * 2 + 2 * n * tn * 4
    vmem_limit = int(max(32 << 20, live + (8 << 20)))

    out = pl.pallas_call(
        fc_bn_relu_kernel,
        out_shape=jax.ShapeDtypeStruct((n, out_p), jnp.float32),
        grid=grid,
        in_specs=[
            pl.BlockSpec((n, tk), lambda j, k: (0, k)),    # x: full batch, K tile
            pl.BlockSpec((tn, tk), lambda j, k: (j, k)),   # W: native (out, in) tile
            pl.BlockSpec((1, tn), lambda j, k: (0, j)),    # gamma
            pl.BlockSpec((1, tn), lambda j, k: (0, j)),    # beta
        ],
        out_specs=pl.BlockSpec((n, tn), lambda j, k: (0, j)),
        compiler_params=pltpu.CompilerParams(
            # out_dim tiles are independent -> shard across TensorCores;
            # K accumulates into the resident output block -> arbitrary.
            dimension_semantics=("parallel", "arbitrary"),
            vmem_limit_bytes=vmem_limit),
    )(x_bf, w_bf, gamma2, beta2)

    if out_p != out_dim:
        out = out[:, :out_dim]
    return out


def reference(x, weight, bias, gammas, betas, bn_domain=0, *, bf16_matmul=True):
    """Pure-JAX reference.  With bf16_matmul=True the Linear operands are rounded
    to bf16 exactly like the kernel's MXU path (f32 accumulation)."""
    if bf16_matmul:
        xm = x.astype(jnp.bfloat16).astype(jnp.float32)
        wm = weight.astype(jnp.bfloat16).astype(jnp.float32)
    else:
        xm, wm = x, weight
    y = jnp.dot(xm, wm.T, precision=lax.Precision.HIGHEST) + bias
    mean = jnp.mean(y, axis=0, keepdims=True)
    var = jnp.mean((y - mean) ** 2, axis=0, keepdims=True)
    out = (y - mean) * lax.rsqrt(var + EPS) * gammas[bn_domain] + betas[bn_domain]
    return jnp.maximum(out, 0.0)


if __name__ == "__main__":
    # Small shapes consistent with the module: batch=8, in_dim=32, out_dim=128.
    N, IN_DIM, OUT_DIM, NUM_DOMAINS = 8, 32, 128, 2

    key = jax.random.PRNGKey(0)
    kx, kw, kb, kg, kbt = jax.random.split(key, 5)

    x = jax.random.normal(kx, (N, IN_DIM), dtype=jnp.float32)

    # nn.Linear default init: U(-1/sqrt(in_dim), 1/sqrt(in_dim)).
    bound = 1.0 / (IN_DIM ** 0.5)
    weight = jax.random.uniform(kw, (OUT_DIM, IN_DIM), jnp.float32, -bound, bound)
    bias = jax.random.uniform(kb, (OUT_DIM,), jnp.float32, -bound, bound)

    # Non-trivial affine params so the gamma/beta path is actually exercised.
    gammas = 1.0 + 0.1 * jax.random.normal(kg, (NUM_DOMAINS, OUT_DIM), jnp.float32)
    betas = 0.1 * jax.random.normal(kbt, (NUM_DOMAINS, OUT_DIM), jnp.float32)

    out = fc_bn_relu_domain(x, weight, bias, gammas, betas, bn_domain=0)
    out = jax.block_until_ready(out)
    assert out.shape == (N, OUT_DIM)

    # Tight check against a reference matching the kernel's bf16-MXU / f32-BN path.
    ref_bf = reference(x, weight, bias, gammas, betas, bn_domain=0, bf16_matmul=True)
    err_bf = float(jnp.max(jnp.abs(out - ref_bf)))
    assert jnp.allclose(out, ref_bf, atol=2e-3, rtol=2e-3), err_bf

    # Loose sanity check against full-f32 module semantics (bf16 operand rounding).
    ref_f32 = reference(x, weight, bias, gammas, betas, bn_domain=0, bf16_matmul=False)
    err_f32 = float(jnp.max(jnp.abs(out - ref_f32)))
    assert jnp.allclose(out, ref_f32, atol=5e-2, rtol=5e-2), err_f32

    print("KERNEL_OK")
</pallas_src>

<mosaic_0001>
module attributes {stable_mosaic.version = 11 : i64} {
  func.func @fc_bn_relu_kernel(%arg0: i32, %arg1: i32, %arg2: memref<8x32xbf16, #tpu.memory_space<vmem>>, %arg3: memref<128x32xbf16, #tpu.memory_space<vmem>>, %arg4: memref<1x128xf32, #tpu.memory_space<vmem>>, %arg5: memref<1x128xf32, #tpu.memory_space<vmem>>, %arg6: memref<8x128xf32, #tpu.memory_space<vmem>>) attributes {dimension_semantics = [#tpu.dimension_semantics<parallel>, #tpu.dimension_semantics<arbitrary>], iteration_bounds = array<i64: 1, 1>, scalar_prefetch = 0 : i64, scratch_operands = 0 : i64, tpu.core_type = #tpu.core_type<tc>, window_params = [{transform_indices = @transform_0, window_bounds = array<i64: 8, 32>}, {transform_indices = @transform_1, window_bounds = array<i64: 128, 32>}, {transform_indices = @transform_2, window_bounds = array<i64: 1, 128>}, {transform_indices = @transform_3, window_bounds = array<i64: 1, 128>}, {transform_indices = @transform_4, window_bounds = array<i64: 8, 128>}]} {
    %c0_i32 = arith.constant 0 : i32
    %0 = arith.cmpi eq, %arg1, %c0_i32 : i32
    %1 = arith.extui %0 : i1 to i32
    %c0_i32_0 = arith.constant 0 : i32
    %2 = arith.cmpi ne, %1, %c0_i32_0 : i32
    scf.if %2 {
      %cst_10 = arith.constant 0.000000e+00 : f32
      %12 = vector.broadcast %cst_10 : f32 to vector<8x128xf32>
      %c0_11 = arith.constant 0 : index
      %c0_12 = arith.constant 0 : index
      %13 = vector.load %arg6[%c0_11, %c0_12] : memref<8x128xf32, #tpu.memory_space<vmem>>, vector<8x128xf32>
      tpu.vector_store %arg6[%c0_11, %c0_12], %12 {strides = array<i32>} : memref<8x128xf32, #tpu.memory_space<vmem>>, vector<8x128xf32>,
    } else {
    }
    %c0 = arith.constant 0 : index
    %c0_1 = arith.constant 0 : index
    %3 = vector.load %arg6[%c0, %c0_1] : memref<8x128xf32, #tpu.memory_space<vmem>>, vector<8x128xf32>
    %c0_2 = arith.constant 0 : index
    %c0_3 = arith.constant 0 : index
    %4 = vector.load %arg2[%c0_2, %c0_3] : memref<8x32xbf16, #tpu.memory_space<vmem>>, vector<8x32xbf16>
    %c0_4 = arith.constant 0 : index
    %c0_5 = arith.constant 0 : index
    %5 = vector.load %arg3[%c0_4, %c0_5] : memref<128x32xbf16, #tpu.memory_space<vmem>>, vector<128x32xbf16>
    %cst = arith.constant dense<0.000000e+00> : vector<8x128xf32>
    %6 = tpu.matmul %4, %5, %cst {dimension_numbers = #tpu.dot_dimension_numbers<[1], [1], [0], [0], [0, 0, 1, 0], [], []>} : vector<8x32xbf16>, vector<128x32xbf16>, vector<8x128xf32> -> vector<8x128xf32>
    %7 = arith.addf %3, %6 : vector<8x128xf32>
    %c0_6 = arith.constant 0 : index
    %c0_7 = arith.constant 0 : index
    %8 = vector.load %arg6[%c0_6, %c0_7] : memref<8x128xf32, #tpu.memory_space<vmem>>, vector<8x128xf32>
    tpu.vector_store %arg6[%c0_6, %c0_7], %7 {strides = array<i32>} : memref<8x128xf32, #tpu.memory_space<vmem>>, vector<8x128xf32>,
    %c0_i32_8 = arith.constant 0 : i32
    %9 = arith.cmpi eq, %arg1, %c0_i32_8 : i32
    %10 = arith.extui %9 : i1 to i32
    %c0_i32_9 = arith.constant 0 : i32
    %11 = arith.cmpi ne, %10, %c0_i32_9 : i32
    scf.if %11 {
      %c0_10 = arith.constant 0 : index
      %c0_11 = arith.constant 0 : index
      %12 = vector.load %arg6[%c0_10, %c0_11] : memref<8x128xf32, #tpu.memory_space<vmem>>, vector<8x128xf32>
      %cst_12 = arith.constant dense<0.000000e+00> : vector<128xf32>
      %13 = vector.multi_reduction <add>, %12, %cst_12 [0] : vector<8x128xf32> to vector<128xf32>
      %14 = vector.shape_cast %13 : vector<128xf32> to vector<1x128xf32>
      %15 = arith.mulf %12, %12 : vector<8x128xf32>
      %cst_13 = arith.constant dense<0.000000e+00> : vector<128xf32>
      %16 = vector.multi_reduction <add>, %15, %cst_13 [0] : vector<8x128xf32> to vector<128xf32>
      %17 = vector.shape_cast %16 : vector<128xf32> to vector<1x128xf32>
      %cst_14 = arith.constant 1.250000e-01 : f32
      %18 = vector.broadcast %cst_14 : f32 to vector<1x128xf32>
      %19 = arith.mulf %14, %18 : vector<1x128xf32>
      %cst_15 = arith.constant 1.250000e-01 : f32
      %20 = vector.broadcast %cst_15 : f32 to vector<1x128xf32>
      %21 = arith.mulf %17, %20 : vector<1x128xf32>
      %22 = arith.mulf %19, %19 : vector<1x128xf32>
      %23 = arith.subf %21, %22 : vector<1x128xf32>
      %cst_16 = arith.constant 0.000000e+00 : f32
      %24 = vector.broadcast %cst_16 : f32 to vector<1x128xf32>
      %25 = arith.maximumf %23, %24 : vector<1x128xf32>
      %cst_17 = arith.constant 9.99999974E-6 : f32
      %26 = vector.broadcast %cst_17 : f32 to vector<1x128xf32>
      %27 = arith.addf %25, %26 : vector<1x128xf32>
      %28 = math.rsqrt %27 : vector<1x128xf32>
      %c0_18 = arith.constant 0 : index
      %c0_19 = arith.constant 0 : index
      %29 = vector.load %arg4[%c0_18, %c0_19] : memref<1x128xf32, #tpu.memory_space<vmem>>, vector<1x128xf32>
      %30 = arith.mulf %29, %28 : vector<1x128xf32>
      %c0_20 = arith.constant 0 : index
      %c0_21 = arith.constant 0 : index
      %31 = vector.load %arg5[%c0_20, %c0_21] : memref<1x128xf32, #tpu.memory_space<vmem>>, vector<1x128xf32>
      %32 = arith.mulf %19, %30 : vector<1x128xf32>
      %33 = arith.subf %31, %32 : vector<1x128xf32>
      %34 = vector.broadcast %30 : vector<1x128xf32> to vector<8x128xf32>
      %35 = arith.mulf %12, %34 : vector<8x128xf32>
      %36 = vector.broadcast %33 : vector<1x128xf32> to vector<8x128xf32>
      %37 = arith.addf %35, %36 : vector<8x128xf32>
      %cst_22 = arith.constant 0.000000e+00 : f32
      %38 = vector.broadcast %cst_22 : f32 to vector<8x128xf32>
      %39 = arith.maximumf %37, %38 : vector<8x128xf32>
      %c0_23 = arith.constant 0 : index
      %c0_24 = arith.constant 0 : index
      %40 = vector.load %arg6[%c0_23, %c0_24] : memref<8x128xf32, #tpu.memory_space<vmem>>, vector<8x128xf32>
      tpu.vector_store %arg6[%c0_23, %c0_24], %39 {strides = array<i32>} : memref<8x128xf32, #tpu.memory_space<vmem>>, vector<8x128xf32>,
    } else {
    }
    return
  }
  func.func @transform_0(%arg0: i32, %arg1: i32) -> (i32, i32) {
    %c0_i32 = arith.constant 0 : i32
    %c0_i32_0 = arith.constant 0 : i32
    return %c0_i32, %arg1 : i32, i32
  }
  func.func @transform_1(%arg0: i32, %arg1: i32) -> (i32, i32) {
    %c0_i32 = arith.constant 0 : i32
    return %arg0, %arg1 : i32, i32
  }
  func.func @transform_2(%arg0: i32, %arg1: i32) -> (i32, i32) {
    %c0_i32 = arith.constant 0 : i32
    %c0_i32_0 = arith.constant 0 : i32
    return %c0_i32, %arg0 : i32, i32
  }
  func.func @transform_3(%arg0: i32, %arg1: i32) -> (i32, i32) {
    %c0_i32 = arith.constant 0 : i32
    %c0_i32_0 = arith.constant 0 : i32
    return %c0_i32, %arg0 : i32, i32
  }
  func.func @transform_4(%arg0: i32, %arg1: i32) -> (i32, i32) {
    %c0_i32 = arith.constant 0 : i32
    %c0_i32_0 = arith.constant 0 : i32
    return %c0_i32, %arg0 : i32, i32
  }
}

</mosaic_0001>

<llo_original>
// kernel: fc_bn_relu_domain.1
$region0: #{fc_bn_relu_domain.1}
  #allocation0 [shape = 'u32[]', space=smem, size = 0x4, offset = 0x4, fixed_abs, tag = 'smem constant byte address 0x4 - core index']
  #allocation1 [shape = 'u32[144,128]{1,0:T(1,128)}', space=vmem, size = 0x12000, scoped, tag = 'internal scratch']
  %s0 = inlined_call_operand.vmem [shape: bf16[8,32], index: 0, kind: input, shape index: {}]
  %s1 = inlined_call_operand.vmem [shape: bf16[128,32], index: 1, kind: input, shape index: {}]
  %s2 = inlined_call_operand.vmem [shape: f32[1,128], index: 2, kind: input, shape index: {}]
  %s3 = inlined_call_operand.vmem [shape: f32[1,128], index: 3, kind: input, shape index: {}]
  %s4 = inlined_call_operand.hbm [shape: f32[8,128], index: 4, kind: output, shape index: {}]
  %s5 = sld [smem:[#allocation0]]
  $region34: #{fc_bn_relu_domain.1} parent=0
    _
  %s7 = ssub.s32 1, %s5
  %s8 = scalar_select 0, %s7, %s5
  $region1: #{fc_bn_relu_domain.1} parent=0
    #allocation2 [shape = 'u8[4096]{0}', space=vmem, size = 0x1000, scoped, tag = 'output window, operand 0, single buffered']
    #allocation3 [shape = 's32[1]{0}', space=sflag, size = 0x4, scoped, tag = 'scoped memory for fc_bn_relu_domain.1']
    %9 = vsyncpa [#allocation3], 0
    // Predicated region
    $region2: #{fc_bn_relu_domain.1} parent=1 // pred_check
      _
    $region3: #{fc_bn_relu_domain.1} parent=1 // pred_check_branch
      %11 = sbr.rel (0) target = $region5
    $region4: #{fc_bn_relu_domain.1} parent=1 // pred_region
      _
    $region5: #{fc_bn_relu_domain.1} parent=1 // pred_fallthru
      _
    // Predicated region
    $region6: #{fc_bn_relu_domain.1} parent=1 // pred_check
      _
    $region7: #{fc_bn_relu_domain.1} parent=1 // pred_check_branch
      %13 = sbr.rel (0) target = $region9
    $region8: #{fc_bn_relu_domain.1} parent=1 // pred_region
      _
    $region9: #{fc_bn_relu_domain.1} parent=1 // pred_fallthru
      _
    // Predicated region
    $region10: #{fc_bn_relu_domain.1} parent=1 // pred_check
      _
    $region11: #{fc_bn_relu_domain.1} parent=1 // pred_check_branch
      %15 = sbr.rel (0) target = $region13
    $region12: #{fc_bn_relu_domain.1} parent=1 // pred_region
      _
    $region13: #{fc_bn_relu_domain.1} parent=1 // pred_fallthru
      _
    // Predicated region
    $region14: #{fc_bn_relu_domain.1} parent=1 // pred_check
      _
    $region15: #{fc_bn_relu_domain.1} parent=1 // pred_check_branch
      %17 = sbr.rel (0) target = $region17
    $region16: #{fc_bn_relu_domain.1} parent=1 // pred_region
      _
    $region17: #{fc_bn_relu_domain.1} parent=1 // pred_fallthru
      _
    %p19 = scmp.eq.s32.totalorder 0, 0
    // Predicated region
    $region18: #{fc_bn_relu_domain.1} parent=1 // pred_check
      %p20 = pneg %p19
    $region19: #{fc_bn_relu_domain.1} parent=1 // pred_check_branch
      %22 = sbr.rel (%p20) target = $region21
    $region20: #{fc_bn_relu_domain.1} parent=1 // pred_region
      %23 = vst [vmem:[#allocation2] sm:$0xff] 0.0
    $region21: #{fc_bn_relu_domain.1} parent=1 // pred_fallthru
      _
    %v24 = vld [vmem:[#allocation2] sm:$0xff]
    %v25 = vld [vmem:[%s0] sm:$0xf]
    %v26 = vld [vmem:[%s1] sm:$0xf]
    %v27 = vld [vmem:[%s1 + $0x4] sm:$0xf]
    %v28 = vld [vmem:[%s1 + $0x8] sm:$0xf]
    %v29 = vld [vmem:[%s1 + $0xc] sm:$0xf]
    %v30 = vld [vmem:[%s1 + $0x10] sm:$0xf]
    %v31 = vld [vmem:[%s1 + $0x14] sm:$0xf]
    %v32 = vld [vmem:[%s1 + $0x18] sm:$0xf]
    %v33 = vld [vmem:[%s1 + $0x1c] sm:$0xf]
    %v34 = vld [vmem:[%s1 + $0x20] sm:$0xf]
    %v35 = vld [vmem:[%s1 + $0x24] sm:$0xf]
    %v36 = vld [vmem:[%s1 + $0x28] sm:$0xf]
    %v37 = vld [vmem:[%s1 + $0x2c] sm:$0xf]
    %v38 = vld [vmem:[%s1 + $0x30] sm:$0xf]
    %v39 = vld [vmem:[%s1 + $0x34] sm:$0xf]
    %v40 = vld [vmem:[%s1 + $0x38] sm:$0xf]
    %v41 = vld [vmem:[%s1 + $0x3c] sm:$0xf]
    %v58 = vunpack.c.l.b16 %v26
    %v59 = vunpack.c.l.b16 %v27
    %v60 = vunpack.c.l.b16 %v28
    %v61 = vunpack.c.l.b16 %v29
    %v62 = vunpack.c.l.b16 %v30
    %v63 = vunpack.c.l.b16 %v31
    %v64 = vunpack.c.l.b16 %v32
    %v65 = vunpack.c.l.b16 %v33
    %v66 = vunpack.c.l.b16 %v34
    %v67 = vunpack.c.l.b16 %v35
    %v68 = vunpack.c.l.b16 %v36
    %v69 = vunpack.c.l.b16 %v37
    %v70 = vunpack.c.l.b16 %v38
    %v71 = vunpack.c.l.b16 %v39
    %v72 = vunpack.c.l.b16 %v40
    %v73 = vunpack.c.l.b16 %v41
    %v74 = vpack.c.b16 %v59, %v58
    %v75 = vpack.c.b16 %v61, %v60
    %v76 = vpack.c.b16 %v63, %v62
    %v77 = vpack.c.b16 %v65, %v64
    %v78 = vpack.c.b16 %v67, %v66
    %v79 = vpack.c.b16 %v69, %v68
    %v80 = vpack.c.b16 %v71, %v70
    %v81 = vpack.c.b16 %v73, %v72
    %vm82 = vcmask 261120
    %v84 = vsel %vm82, %v25, 0
    %v87 = vsel %vm82, %v74, 0
    %v90 = vsel %vm82, %v75, 0
    %v93 = vsel %vm82, %v76, 0
    %v96 = vsel %vm82, %v77, 0
    %v99 = vsel %vm82, %v78, 0
    %v102 = vsel %vm82, %v79, 0
    %v105 = vsel %vm82, %v80, 0
    %v108 = vsel %vm82, %v81, 0
    %110 = vmatprep.subr.bf16.mxu0 0
    %111 = vmatpush1.bf16.xpose.msra.mxu0 %v108
    %112 = vmatprep.subr.bf16.mxu0 0
    %113 = vmatpush1.bf16.xpose.msra.mxu0 %v105
    %114 = vmatprep.subr.bf16.mxu0 0
    %115 = vmatpush1.bf16.xpose.msra.mxu0 %v102
    %116 = vmatprep.subr.bf16.mxu0 0
    %117 = vmatpush1.bf16.xpose.msra.mxu0 %v99
    %118 = vmatprep.subr.bf16.mxu0 0
    %119 = vmatpush1.bf16.xpose.msra.mxu0 %v96
    %120 = vmatprep.subr.bf16.mxu0 0
    %121 = vmatpush1.bf16.xpose.msra.mxu0 %v93
    %122 = vmatprep.subr.bf16.mxu0 0
    %123 = vmatpush1.bf16.xpose.msra.mxu0 %v90
    %124 = vmatprep.subr.bf16.mxu0 0
    %125 = vmatpush1.bf16.xpose.msra.mxu0 %v87
    %126 = vmatprep.subr.bf16.mxu0 0
    %127 = vmatpush2.bf16.xpose.msra.mxu0 0
    %128 = vmatprep.subr.bf16.mxu0 0
    %129 = vmatpush2.bf16.xpose.msra.mxu0 0
    %130 = vmatprep.subr.bf16.mxu0 0
    %131 = vmatpush2.bf16.xpose.msra.mxu0 0
    %132 = vmatprep.subr.bf16.mxu0 0
    %133 = vmatpush2.bf16.xpose.msra.mxu0 0
    %134 = vmatprep.subr.bf16.mxu0 0
    %135 = vmatpush2.bf16.xpose.msra.mxu0 0
    %136 = vmatprep.subr.bf16.mxu0 0
    %137 = vmatpush2.bf16.xpose.msra.mxu0 0
    %138 = vmatprep.subr.bf16.mxu0 0
    %139 = vmatpush2.bf16.xpose.msra.mxu0 0
    %140 = vmatprep.subr.bf16.mxu0 0
    %141 = vmatpush2.bf16.xpose.msra.mxu0 0
    %142 = vmatprep.mubr.bf16.mxu0 0
    %143 = vmatmul.mubr.bf16.gmra.mxu0 %v84
    %v144 = vpop.f32.mrf.mxu0
    %v145 = vadd.f32 0.0, %v144
    %v146 = vpop.f32.mrf.mxu0
    %v147 = vpop.f32.mrf.mxu0
    %v148 = vpop.f32.mrf.mxu0
    %149 = vdwg.mxu0
    %v150 = vadd.f32 %v24, %v145
    %151 = vst [vmem:[#allocation2] sm:$0xff] %v150
    // Predicated region
    $region22: #{fc_bn_relu_domain.1} parent=1 // pred_check
      %p152 = pneg %p19
    $region23: #{fc_bn_relu_domain.1} parent=1 // pred_check_branch
      %154 = sbr.rel (%p152) target = $region25
    $region24: #{fc_bn_relu_domain.1} parent=1 // pred_region
      %v155 = vld [vmem:[#allocation2] sm:$0xff]
      %v156 = vrot.slane %v155, 4
      %v157 = vadd.f32 %v155, %v156
      %v158 = vrot.slane %v157, 2
      %v159 = vadd.f32 %v157, %v158
      %v160 = vrot.slane %v159, 1
      %v161 = vadd.f32 %v159, %v160
      %v162 = vmul.f32 %v155, %v155
      %v163 = vrot.slane %v162, 4
      %v164 = vadd.f32 %v162, %v163
      %v165 = vrot.slane %v164, 2
      %v166 = vadd.f32 %v164, %v165
      %v167 = vrot.slane %v166, 1
      %v168 = vadd.f32 %v166, %v167
      %v169 = vmul.f32 %v161, 0.125
      %v170 = vmul.f32 %v168, 0.125
      %v171 = vmul.f32 %v169, %v169
      %v172 = vsub.f32 %v170, %v171
      %v173 = vmax.f32 %v172, 0.0
      %v174 = vadd.f32 %v173, 1e-05
      %v175 = vrsqrt.pop %v174
      %v176 = vld [vmem:[%s2] sm:$0x1]
      %v177 = vmul.f32 %v176, %v175
      %v178 = vld [vmem:[%s3] sm:$0x1]
      %v179 = vmul.f32 %v169, %v177
      %v180 = vsub.f32 %v178, %v179
      %v182 = vlaneseq
      %v183 = vshrl.u32 %v182, 7
      %v184 = vsub.s32 0, %v183
      %v185 = vrot.slane %v177, %v184
      %v187 = vmul.f32 %v155, %v185
      %v189 = vlaneseq
      %v190 = vshrl.u32 %v189, 7
      %v191 = vsub.s32 0, %v190
      %v192 = vrot.slane %v180, %v191
      %v194 = vadd.f32 %v187, %v192
      %v195 = vmax.f32 %v194, 0.0
      %196 = vst [vmem:[#allocation2] sm:$0xff] %v195
    $region25: #{fc_bn_relu_domain.1} parent=1 // pred_fallthru
      _
    // Predicated region
    $region26: #{fc_bn_relu_domain.1} parent=1 // pred_check
      _
    $region27: #{fc_bn_relu_domain.1} parent=1 // pred_check_branch
      %198 = sbr.rel (0) target = $region29
    $region28: #{fc_bn_relu_domain.1} parent=1 // pred_region
      %s200 = ssub.s32 128, 128
      %201 = vsyncadd [#allocation3], %s200
      %s203 = sshll.u32 [#allocation2], 4
      %s204 = int_to_ptr.vmem [resolvable:$true] %s203
      %206 = dma.vmem_to_hbm [thread:$0]  %s204, 128, %s4, [#allocation3]
    $region29: #{fc_bn_relu_domain.1} parent=1 // pred_fallthru
      _
    // Predicated region
    $region30: #{fc_bn_relu_domain.1} parent=1 // pred_check
      _
    $region31: #{fc_bn_relu_domain.1} parent=1 // pred_check_branch
      %208 = sbr.rel (0) target = $region33
    $region32: #{fc_bn_relu_domain.1} parent=1 // pred_region
      %209 = dma.done [#allocation3], 128
    $region33: #{fc_bn_relu_domain.1} parent=1 // pred_fallthru
      _
    %210 = vsyncpa [#allocation3], 1

</llo_original>
